<compile_context>
chip_gen: v6e
topology: v6e:2x2x1
jax: 0.10.0
libtpu: 0.0.40
codegen_flags: <defaults>
</compile_context>

<pallas_src>
import functools

import jax
import jax.numpy as jnp
from jax.experimental import pallas as pl
from jax.experimental.pallas import tpu as pltpu

LANE = 128
SUB = 8
MAX_BLOCK_ROWS = 2048  # (2048, 128) f32 = 1 MiB per input block


def _round_up(v, m):
    return (v + m - 1) // m * m


def _mixed_loss_kernel(x_ref, t_ref, o_ref, *, gamma, block_rows, n_valid, masked):
    x = x_ref[...].astype(jnp.float32)
    t = t_ref[...].astype(jnp.float32)

    # Shared transcendental: e = exp(-|x|)
    abs_x = jnp.abs(x)
    e = jnp.exp(-abs_x)          # EUP 1
    log1pe = jnp.log1p(e)        # EUP 2

    # FocalLoss elementwise terms.
    #   x + clamp(-x, 0) == relu(x);  log(exp(-max_val)+exp(-x-max_val)) == log1p(e)
    bce = jnp.maximum(x, 0.0) - x * t + log1pe
    #   logsigmoid(-x*(2t-1)) = min(z,0) - log1p(exp(-|z|));  binary t => |z| == |x|
    z = x * (1.0 - 2.0 * t)
    logsig = jnp.minimum(z, 0.0) - log1pe
    focal = jnp.exp(gamma * logsig) * bce   # EUP 3

    # sigmoid(x) = where(x>=0, 1/(1+e), e/(1+e))
    r = 1.0 / (1.0 + e)                     # EUP 4 (exact divide for 1e-5 tol)
    sig = jnp.where(x >= 0.0, r, e * r)
    st = sig * t

    if masked:
        # Mask padded lane-tail zeros and out-of-bounds rows of the last block.
        row = jax.lax.broadcasted_iota(jnp.int32, (block_rows, LANE), 0)
        lane = jax.lax.broadcasted_iota(jnp.int32, (block_rows, LANE), 1)
        gidx = (pl.program_id(0) * block_rows + row) * LANE + lane
        valid = gidx < n_valid
        focal = jnp.where(valid, focal, 0.0)
        sig = jnp.where(valid, sig, 0.0)
        t = jnp.where(valid, t, 0.0)
        st = jnp.where(valid, st, 0.0)

    def part(v):
        # (block_rows, 128) -> (block_rows//8, 8, 128) -> sum over leading axis:
        # pure vreg-wise VPU adds, no cross-lane/sublane reduce in the steady state.
        return v.reshape(block_rows // SUB, SUB, LANE).sum(axis=0)

    o_ref[0, 0] = part(focal)   # focal numerator
    o_ref[0, 1] = part(sig)     # sum(sigmoid(x))
    o_ref[0, 2] = part(t)       # sum(target)
    o_ref[0, 3] = part(st)      # intersection


def mixed_loss(x, target, *, alpha=10.0, gamma=2.0):
    """alpha * focal(x, target).mean() - log(dice_score(x, target)) -> scalar."""
    n = x.size
    xf = x.reshape(-1)
    tf = target.reshape(-1)
    if tf.dtype == jnp.bool_:
        tf = tf.astype(jnp.int8)   # keep narrow; cast to f32 in-kernel

    # Pad flat length to a multiple of 128 only when necessary (layout requirement).
    n_pad = _round_up(n, LANE)
    if n_pad != n:
        xf = jnp.pad(xf, (0, n_pad - n))
        tf = jnp.pad(tf, (0, n_pad - n))
    rows = n_pad // LANE

    block_rows = min(MAX_BLOCK_ROWS, _round_up(rows, SUB))
    grid = pl.cdiv(rows, block_rows)
    masked = (grid * block_rows * LANE) != n

    x2 = xf.reshape(rows, LANE)
    t2 = tf.reshape(rows, LANE)

    partials = pl.pallas_call(
        functools.partial(
            _mixed_loss_kernel,
            gamma=float(gamma),
            block_rows=block_rows,
            n_valid=n,
            masked=masked,
        ),
        out_shape=jax.ShapeDtypeStruct((grid, 4, SUB, LANE), jnp.float32),
        grid=(grid,),
        in_specs=[
            pl.BlockSpec((block_rows, LANE), lambda i: (i, 0)),
            pl.BlockSpec((block_rows, LANE), lambda i: (i, 0)),
        ],
        out_specs=pl.BlockSpec((1, 4, SUB, LANE), lambda i: (i, 0, 0, 0)),
        compiler_params=pltpu.CompilerParams(
            dimension_semantics=("parallel",),     # independent blocks: dual-TC on v7x
            vmem_limit_bytes=32 * 1024 * 1024,     # headroom on v5e's 16 MiB default
        ),
    )(x2, t2)

    # Single cross-lane reduce + scalar epilogue (reviewer-recommended wrapper combine).
    sums = jnp.sum(partials, axis=(0, 2, 3))       # (4,)
    focal_mean = sums[0] / float(n)
    dice = (2.0 * sums[3] + 1.0) / (sums[1] + sums[2] + 1.0)
    return alpha * focal_mean - jnp.log(dice)


def _mixed_loss_ref(x, t, *, alpha=10.0, gamma=2.0):
    x = x.astype(jnp.float32)
    t = t.astype(jnp.float32)
    max_val = jnp.maximum(-x, 0.0)
    bce = x - x * t + max_val + jnp.log(jnp.exp(-max_val) + jnp.exp(-x - max_val))
    invprobs = jax.nn.log_sigmoid(-x * (t * 2.0 - 1.0))
    focal = jnp.mean(jnp.exp(invprobs * gamma) * bce)
    sig = jax.nn.sigmoid(x)
    inter = jnp.sum(sig * t)
    dice = (2.0 * inter + 1.0) / (jnp.sum(sig) + jnp.sum(t) + 1.0)
    return alpha * focal - jnp.log(dice)


if __name__ == "__main__":
    key = jax.random.PRNGKey(0)
    k1, k2, k3, k4 = jax.random.split(key, 4)

    alpha, gamma = 10.0, 2.0

    # Case 1: lane-aligned NCHW input (B, C, H, W) = (2, 4, 16, 16)
    logits = jax.random.normal(k1, (2, 4, 16, 16), dtype=jnp.float32) * 2.0
    target = (jax.random.uniform(k2, (2, 4, 16, 16)) > 0.5).astype(jnp.float32)
    out = jax.block_until_ready(mixed_loss(logits, target, alpha=alpha, gamma=gamma))
    ref = _mixed_loss_ref(logits, target, alpha=alpha, gamma=gamma)
    assert jnp.allclose(out, ref, rtol=1e-5, atol=1e-5), (out, ref)

    # Case 2: ragged size -> exercises the in-kernel tail mask path
    logits2 = jax.random.normal(k3, (2, 3, 7, 11), dtype=jnp.float32) * 2.0
    target2 = (jax.random.uniform(k4, (2, 3, 7, 11)) > 0.5).astype(jnp.float32)
    out2 = jax.block_until_ready(mixed_loss(logits2, target2, alpha=alpha, gamma=gamma))
    ref2 = _mixed_loss_ref(logits2, target2, alpha=alpha, gamma=gamma)
    assert jnp.allclose(out2, ref2, rtol=1e-5, atol=1e-5), (out2, ref2)

    print("KERNEL_OK")
</pallas_src>

<mosaic_0001>
module attributes {stable_mosaic.version = 11 : i64} {
  func.func @_mixed_loss_kernel(%arg0: i32, %arg1: memref<16x128xf32, #tpu.memory_space<vmem>>, %arg2: memref<16x128xf32, #tpu.memory_space<vmem>>, %arg3: memref<1x4x8x128xf32, #tpu.memory_space<vmem>>) attributes {dimension_semantics = [#tpu.dimension_semantics<parallel>], iteration_bounds = array<i64: 1>, scalar_prefetch = 0 : i64, scratch_operands = 0 : i64, tpu.core_type = #tpu.core_type<tc>, window_params = [{transform_indices = @transform_0, window_bounds = array<i64: 16, 128>}, {transform_indices = @transform_1, window_bounds = array<i64: 16, 128>}, {transform_indices = @transform_2, window_bounds = array<i64: 1, 4, 8, 128>}]} {
    %c0 = arith.constant 0 : index
    %c0_0 = arith.constant 0 : index
    %0 = vector.load %arg1[%c0, %c0_0] : memref<16x128xf32, #tpu.memory_space<vmem>>, vector<16x128xf32>
    %c0_1 = arith.constant 0 : index
    %c0_2 = arith.constant 0 : index
    %1 = vector.load %arg2[%c0_1, %c0_2] : memref<16x128xf32, #tpu.memory_space<vmem>>, vector<16x128xf32>
    %2 = math.absf %0 : vector<16x128xf32>
    %cst = arith.constant 0.000000e+00 : f32
    %3 = vector.broadcast %cst : f32 to vector<16x128xf32>
    %4 = arith.subf %3, %2 : vector<16x128xf32>
    %5 = math.exp %4 : vector<16x128xf32>
    %6 = math.log1p %5 : vector<16x128xf32>
    %cst_3 = arith.constant 0.000000e+00 : f32
    %7 = vector.broadcast %cst_3 : f32 to vector<16x128xf32>
    %8 = arith.maximumf %0, %7 : vector<16x128xf32>
    %9 = arith.mulf %0, %1 : vector<16x128xf32>
    %10 = arith.subf %8, %9 : vector<16x128xf32>
    %11 = arith.addf %10, %6 : vector<16x128xf32>
    %cst_4 = arith.constant 2.000000e+00 : f32
    %12 = vector.broadcast %cst_4 : f32 to vector<16x128xf32>
    %13 = arith.mulf %12, %1 : vector<16x128xf32>
    %cst_5 = arith.constant 1.000000e+00 : f32
    %14 = vector.broadcast %cst_5 : f32 to vector<16x128xf32>
    %15 = arith.subf %14, %13 : vector<16x128xf32>
    %16 = arith.mulf %0, %15 : vector<16x128xf32>
    %cst_6 = arith.constant 0.000000e+00 : f32
    %17 = vector.broadcast %cst_6 : f32 to vector<16x128xf32>
    %18 = arith.minimumf %16, %17 : vector<16x128xf32>
    %19 = arith.subf %18, %6 : vector<16x128xf32>
    %cst_7 = arith.constant 2.000000e+00 : f32
    %20 = vector.broadcast %cst_7 : f32 to vector<16x128xf32>
    %21 = arith.mulf %20, %19 : vector<16x128xf32>
    %22 = math.exp %21 : vector<16x128xf32>
    %23 = arith.mulf %22, %11 : vector<16x128xf32>
    %cst_8 = arith.constant 1.000000e+00 : f32
    %24 = vector.broadcast %cst_8 : f32 to vector<16x128xf32>
    %25 = arith.addf %24, %5 : vector<16x128xf32>
    %cst_9 = arith.constant 1.000000e+00 : f32
    %26 = vector.broadcast %cst_9 : f32 to vector<16x128xf32>
    %27 = arith.divf %26, %25 : vector<16x128xf32>
    %cst_10 = arith.constant 0.000000e+00 : f32
    %28 = vector.broadcast %cst_10 : f32 to vector<16x128xf32>
    %29 = arith.cmpf oge, %0, %28 : vector<16x128xf32>
    %30 = arith.mulf %5, %27 : vector<16x128xf32>
    %31 = arith.select %29, %27, %30 : vector<16x128xi1>, vector<16x128xf32>
    %32 = arith.mulf %31, %1 : vector<16x128xf32>
    %33 = vector.shape_cast %23 : vector<16x128xf32> to vector<2x8x128xf32>
    %cst_11 = arith.constant dense<0.000000e+00> : vector<8x128xf32>
    %34 = vector.multi_reduction <add>, %33, %cst_11 [0] : vector<2x8x128xf32> to vector<8x128xf32>
    %c0_12 = arith.constant 0 : index
    %c0_13 = arith.constant 0 : index
    %c0_14 = arith.constant 0 : index
    %c0_15 = arith.constant 0 : index
    %35 = vector.load %arg3[%c0_12, %c0_13, %c0_14, %c0_15] : memref<1x4x8x128xf32, #tpu.memory_space<vmem>>, vector<1x1x8x128xf32>
    %36 = vector.shape_cast %35 : vector<1x1x8x128xf32> to vector<8x128xf32>
    %37 = vector.shape_cast %34 : vector<8x128xf32> to vector<1x1x8x128xf32>
    tpu.vector_store %arg3[%c0_12, %c0_13, %c0_14, %c0_15], %37 {strides = array<i32>} : memref<1x4x8x128xf32, #tpu.memory_space<vmem>>, vector<1x1x8x128xf32>,
    %38 = vector.shape_cast %31 : vector<16x128xf32> to vector<2x8x128xf32>
    %cst_16 = arith.constant dense<0.000000e+00> : vector<8x128xf32>
    %39 = vector.multi_reduction <add>, %38, %cst_16 [0] : vector<2x8x128xf32> to vector<8x128xf32>
    %c0_17 = arith.constant 0 : index
    %c1 = arith.constant 1 : index
    %c0_18 = arith.constant 0 : index
    %c0_19 = arith.constant 0 : index
    %40 = vector.load %arg3[%c0_17, %c1, %c0_18, %c0_19] : memref<1x4x8x128xf32, #tpu.memory_space<vmem>>, vector<1x1x8x128xf32>
    %41 = vector.shape_cast %40 : vector<1x1x8x128xf32> to vector<8x128xf32>
    %42 = vector.shape_cast %39 : vector<8x128xf32> to vector<1x1x8x128xf32>
    tpu.vector_store %arg3[%c0_17, %c1, %c0_18, %c0_19], %42 {strides = array<i32>} : memref<1x4x8x128xf32, #tpu.memory_space<vmem>>, vector<1x1x8x128xf32>,
    %43 = vector.shape_cast %1 : vector<16x128xf32> to vector<2x8x128xf32>
    %cst_20 = arith.constant dense<0.000000e+00> : vector<8x128xf32>
    %44 = vector.multi_reduction <add>, %43, %cst_20 [0] : vector<2x8x128xf32> to vector<8x128xf32>
    %c0_21 = arith.constant 0 : index
    %c2 = arith.constant 2 : index
    %c0_22 = arith.constant 0 : index
    %c0_23 = arith.constant 0 : index
    %45 = vector.load %arg3[%c0_21, %c2, %c0_22, %c0_23] : memref<1x4x8x128xf32, #tpu.memory_space<vmem>>, vector<1x1x8x128xf32>
    %46 = vector.shape_cast %45 : vector<1x1x8x128xf32> to vector<8x128xf32>
    %47 = vector.shape_cast %44 : vector<8x128xf32> to vector<1x1x8x128xf32>
    tpu.vector_store %arg3[%c0_21, %c2, %c0_22, %c0_23], %47 {strides = array<i32>} : memref<1x4x8x128xf32, #tpu.memory_space<vmem>>, vector<1x1x8x128xf32>,
    %48 = vector.shape_cast %32 : vector<16x128xf32> to vector<2x8x128xf32>
    %cst_24 = arith.constant dense<0.000000e+00> : vector<8x128xf32>
    %49 = vector.multi_reduction <add>, %48, %cst_24 [0] : vector<2x8x128xf32> to vector<8x128xf32>
    %c0_25 = arith.constant 0 : index
    %c3 = arith.constant 3 : index
    %c0_26 = arith.constant 0 : index
    %c0_27 = arith.constant 0 : index
    %50 = vector.load %arg3[%c0_25, %c3, %c0_26, %c0_27] : memref<1x4x8x128xf32, #tpu.memory_space<vmem>>, vector<1x1x8x128xf32>
    %51 = vector.shape_cast %50 : vector<1x1x8x128xf32> to vector<8x128xf32>
    %52 = vector.shape_cast %49 : vector<8x128xf32> to vector<1x1x8x128xf32>
    tpu.vector_store %arg3[%c0_25, %c3, %c0_26, %c0_27], %52 {strides = array<i32>} : memref<1x4x8x128xf32, #tpu.memory_space<vmem>>, vector<1x1x8x128xf32>,
    return
  }
  func.func @transform_0(%arg0: i32) -> (i32, i32) {
    %c0_i32 = arith.constant 0 : i32
    %c0_i32_0 = arith.constant 0 : i32
    return %arg0, %c0_i32 : i32, i32
  }
  func.func @transform_1(%arg0: i32) -> (i32, i32) {
    %c0_i32 = arith.constant 0 : i32
    %c0_i32_0 = arith.constant 0 : i32
    return %arg0, %c0_i32 : i32, i32
  }
  func.func @transform_2(%arg0: i32) -> (i32, i32, i32, i32) {
    %c0_i32 = arith.constant 0 : i32
    %c0_i32_0 = arith.constant 0 : i32
    %c0_i32_1 = arith.constant 0 : i32
    %c0_i32_2 = arith.constant 0 : i32
    return %arg0, %c0_i32, %c0_i32_0, %c0_i32_1 : i32, i32, i32, i32
  }
}

</mosaic_0001>

<llo_original>
// kernel: tpu_custom_call.1
$region0: #{tpu_custom_call.1}
  #allocation0 [shape = 'u32[]', space=smem, size = 0x4, offset = 0x4, fixed_abs, tag = 'smem constant byte address 0x4 - core index']
  #allocation1 [shape = 'u32[144,128]{1,0:T(1,128)}', space=vmem, size = 0x12000, scoped, tag = 'internal scratch']
  %s0 = inlined_call_operand.hbm [shape: f32[16,128], index: 0, kind: input, shape index: {}]
  %s1 = inlined_call_operand.hbm [shape: f32[16,128], index: 1, kind: input, shape index: {}]
  %s2 = inlined_call_operand.hbm [shape: f32[1,4,8,128], index: 2, kind: output, shape index: {}]
  %s3 = sld [smem:[#allocation0]]
  $region26: #{tpu_custom_call.1} parent=0
    _
  %s5 = ssub.s32 1, %s3
  %s6 = scalar_select 0, %s5, %s3
  $region1: #{tpu_custom_call.1} parent=0
    #allocation2 [shape = 'u8[8192]{0}', space=vmem, size = 0x2000, scoped, tag = 'input window, operand 0, single buffered']
    #allocation3 [shape = 's32[1]{0}', space=sflag, size = 0x4, scoped, tag = 'scoped memory for tpu_custom_call.1']
    #allocation4 [shape = 's32[1]{0}', space=sflag, size = 0x4, scoped, tag = 'scoped memory for tpu_custom_call.1']
    #allocation5 [shape = 'u8[8192]{0}', space=vmem, size = 0x2000, scoped, tag = 'input window, operand 1, single buffered']
    #allocation6 [shape = 's32[1]{0}', space=sflag, size = 0x4, scoped, tag = 'scoped memory for tpu_custom_call.1']
    #allocation7 [shape = 'u8[16384]{0}', space=vmem, size = 0x4000, scoped, tag = 'output window, operand 0, single buffered']
    %7 = vsyncpa [#allocation3], 0
    %8 = vsyncpa [#allocation6], 0
    %9 = vsyncpa [#allocation4], 0
    // Predicated region
    $region2: #{tpu_custom_call.1} parent=1 // pred_check
      _
    $region3: #{tpu_custom_call.1} parent=1 // pred_check_branch
      %11 = sbr.rel (0) target = $region5
    $region4: #{tpu_custom_call.1} parent=1 // pred_region
      %s13 = ssub.s32 256, 256
      %14 = vsyncadd [#allocation3], %s13
      %s15 = sshll.u32 [#allocation2], 4
      %s16 = int_to_ptr.vmem [resolvable:$true] %s15
      %21 = dma.hbm_to_vmem [thread:$0]  %s0, 256, %s16, [#allocation3], 128, 128, 8
    $region5: #{tpu_custom_call.1} parent=1 // pred_fallthru
      _
    // Predicated region
    $region6: #{tpu_custom_call.1} parent=1 // pred_check
      _
    $region7: #{tpu_custom_call.1} parent=1 // pred_check_branch
      %23 = sbr.rel (0) target = $region9
    $region8: #{tpu_custom_call.1} parent=1 // pred_region
      %s25 = ssub.s32 256, 256
      %26 = vsyncadd [#allocation6], %s25
      %s27 = sshll.u32 [#allocation5], 4
      %s28 = int_to_ptr.vmem [resolvable:$true] %s27
      %33 = dma.hbm_to_vmem [thread:$0]  %s1, 256, %s28, [#allocation6], 128, 128, 8
    $region9: #{tpu_custom_call.1} parent=1 // pred_fallthru
      _
    // Predicated region
    $region10: #{tpu_custom_call.1} parent=1 // pred_check
      _
    $region11: #{tpu_custom_call.1} parent=1 // pred_check_branch
      %35 = sbr.rel (0) target = $region13
    $region12: #{tpu_custom_call.1} parent=1 // pred_region
      %36 = dma.done [#allocation3], 256
    $region13: #{tpu_custom_call.1} parent=1 // pred_fallthru
      _
    // Predicated region
    $region14: #{tpu_custom_call.1} parent=1 // pred_check
      _
    $region15: #{tpu_custom_call.1} parent=1 // pred_check_branch
      %38 = sbr.rel (0) target = $region17
    $region16: #{tpu_custom_call.1} parent=1 // pred_region
      %39 = dma.done [#allocation6], 256
    $region17: #{tpu_custom_call.1} parent=1 // pred_fallthru
      _
    %v40 = vld [vmem:[#allocation2] sm:$0xff]
    %v41 = vld [vmem:[#allocation2 + $0x8] sm:$0xff]
    %v42 = vld [vmem:[#allocation5] sm:$0xff]
    %v43 = vld [vmem:[#allocation5 + $0x8] sm:$0xff]
    %v44 = vand.u32 2147483647, %v40
    %v45 = vand.u32 2147483647, %v41
    %v46 = vsub.f32 0.0, %v44
    %v47 = vsub.f32 0.0, %v45
    %v48 = vmul.f32 %v46, 1.442695
    %v49 = vpow.pop %v48
    %v50 = vmul.f32 %v47, 1.442695
    %v51 = vpow.pop %v50
    %v52 = vadd.f32 %v49, 1.0
    %v53 = vlog2.pop %v52
    %v54 = vmul.f32 %v53, 0.6931472
    %v55 = vmul.f32 -0.5, %v49
    %v56 = vadd.f32 %v55, 1.0
    %v57 = vmul.f32 %v56, %v49
    %v58 = vand.u32 2147483647, %v49
    %vm59 = vcmp.lt.f32.partialorder %v58, 0.0004427343
    %v60 = vsel %vm59, %v57, %v54
    %v61 = vadd.f32 %v51, 1.0
    %v62 = vlog2.pop %v61
    %v63 = vmul.f32 %v62, 0.6931472
    %v64 = vmul.f32 -0.5, %v51
    %v65 = vadd.f32 %v64, 1.0
    %v66 = vmul.f32 %v65, %v51
    %v67 = vand.u32 2147483647, %v51
    %vm68 = vcmp.lt.f32.partialorder %v67, 0.0004427343
    %v69 = vsel %vm68, %v66, %v63
    %v70 = vmax.f32 %v40, 0.0
    %v71 = vmax.f32 %v41, 0.0
    %v72 = vmul.f32 %v40, %v42
    %v73 = vmul.f32 %v41, %v43
    %v74 = vsub.f32 %v70, %v72
    %v75 = vsub.f32 %v71, %v73
    %v76 = vadd.f32 %v74, %v60
    %v77 = vadd.f32 %v75, %v69
    %v78 = vmul.f32 %v42, 2.0
    %v79 = vmul.f32 %v43, 2.0
    %v80 = vsub.f32 1.0, %v78
    %v81 = vsub.f32 1.0, %v79
    %v82 = vmul.f32 %v40, %v80
    %v83 = vmul.f32 %v41, %v81
    %v84 = vmin.f32 %v82, 0.0
    %v85 = vmin.f32 %v83, 0.0
    %v86 = vsub.f32 %v84, %v60
    %v87 = vsub.f32 %v85, %v69
    %v88 = vmul.f32 %v86, 2.0
    %v89 = vmul.f32 %v87, 2.0
    %v90 = vmul.f32 %v88, 1.442695
    %v91 = vpow.pop %v90
    %v92 = vmul.f32 %v89, 1.442695
    %v93 = vpow.pop %v92
    %v94 = vmul.f32 %v91, %v76
    %v95 = vmul.f32 %v93, %v77
    %v96 = vadd.f32 %v49, 1.0
    %v97 = vadd.f32 %v51, 1.0
    %v98 = vrcp.pop %v96
    %v99 = vmul.f32 1.0, %v98
    %v100 = vrcp.pop %v97
    %v101 = vmul.f32 1.0, %v100
    %vm102 = vcmp.ge.f32.partialorder %v40, 0.0
    %vm103 = vcmp.ge.f32.partialorder %v41, 0.0
    %v104 = vmul.f32 %v49, %v99
    %v105 = vmul.f32 %v51, %v101
    %v106 = vsel %vm102, %v99, %v104
    %v107 = vsel %vm103, %v101, %v105
    %v108 = vmul.f32 %v106, %v42
    %v109 = vmul.f32 %v107, %v43
    %v110 = vadd.f32 %v94, %v95
    %111 = vst [vmem:[#allocation7] sm:$0xff] %v110
    %v112 = vadd.f32 %v106, %v107
    %s113 = scalar_lea.vmem [#allocation7], 8
    %114 = vst [vmem:[%s113] sm:$0xff] %v112
    %v115 = vadd.f32 %v42, %v43
    %s116 = scalar_lea.vmem [#allocation7], 16
    %117 = vst [vmem:[%s116] sm:$0xff] %v115
    %v118 = vadd.f32 %v108, %v109
    %s119 = scalar_lea.vmem [#allocation7], 24
    %120 = vst [vmem:[%s119] sm:$0xff] %v118
    // Predicated region
    $region18: #{tpu_custom_call.1} parent=1 // pred_check
      _
    $region19: #{tpu_custom_call.1} parent=1 // pred_check_branch
      %122 = sbr.rel (0) target = $region21
    $region20: #{tpu_custom_call.1} parent=1 // pred_region
      %s124 = ssub.s32 512, 512
      %125 = vsyncadd [#allocation4], %s124
      %s126 = sshll.u32 [#allocation7], 4
      %s127 = int_to_ptr.vmem [resolvable:$true] %s126
      %132 = dma.vmem_to_hbm [thread:$0]  %s127, 512, %s2, [#allocation4], 128, 128, 8
    $region21: #{tpu_custom_call.1} parent=1 // pred_fallthru
      _
    // Predicated region
    $region22: #{tpu_custom_call.1} parent=1 // pred_check
      _
    $region23: #{tpu_custom_call.1} parent=1 // pred_check_branch
      %134 = sbr.rel (0) target = $region25
    $region24: #{tpu_custom_call.1} parent=1 // pred_region
      %135 = dma.done [#allocation4], 512
    $region25: #{tpu_custom_call.1} parent=1 // pred_fallthru
      _
    %136 = vsyncpa [#allocation3], 1
    %137 = vsyncpa [#allocation6], 1
    %138 = vsyncpa [#allocation4], 1

</llo_original>
